<compile_context>
chip_gen: v5e
topology: v5e:2x2
jax: 0.10.0
libtpu: 0.0.40
codegen_flags: <defaults>
</compile_context>

<pallas_src>
import math
from functools import partial

import jax
import jax.numpy as jnp
import numpy as np
from jax.experimental import pallas as pl
from jax.experimental.pallas import tpu as pltpu


# --------------------------------------------------------------------------- kernel

def _make_flexible_mlp_kernel(num_hidden_layers, activation=None):
    """Kernel factory. Ref order: (x, off, scl, w_h0, b_h0, ..., w_out, b_out, out)."""
    if activation is None:
        # Module's `activation` is a constructor arg; ReLU assumed (pass another callable to change).
        activation = lambda v: jnp.maximum(v, 0.0)

    def kernel(*refs):
        x_ref, off_ref, scl_ref = refs[:3]
        o_ref = refs[-1]
        layer_refs = refs[3:-1]

        # f32 batch tile streamed straight from HBM; all VPU/EUP math stays f32 (v5e-safe).
        # normalize_kinematics folded into one per-column affine: (x - min) * (1 / (max - min)).
        h = (x_ref[...] - off_ref[...]) * scl_ref[...]

        # Hidden stack: Linear -> activation.  Dropout is identity in eval mode.
        # TODO(synk): training-mode dropout (pltpu.prng_random_bits mask) not implemented.
        for l in range(num_hidden_layers):
            w = layer_refs[2 * l][...]          # (in, out)  bf16 -> MXU bf16 path
            b = layer_refs[2 * l + 1][...]      # (1, out)   f32
            h = activation(
                jnp.dot(h.astype(w.dtype), w, preferred_element_type=jnp.float32) + b)

        # Final Linear + tanh, computed transposed so the stored block is lane-dense:
        #   params_t[o, t] = sum_k w_out[o, k] * h[t, k]        (A @ B^T on the MXU)
        w_out = layer_refs[-2][...]             # (out_size, hidden_last) bf16 -- torch layout
        b_out = layer_refs[-1][...]             # (out_size, 1) f32
        params_t = jax.lax.dot_general(
            w_out, h.astype(w_out.dtype), (((1,), (1,)), ((), ())),
            preferred_element_type=jnp.float32)
        o_ref[...] = jnp.tanh(params_t + b_out).astype(o_ref.dtype)

    return kernel


# --------------------------------------------------------------------------- helpers

def _round_up(n, m):
    return ((n + m - 1) // m) * m


def _normalization_constants(input_size, n_agents,
                             min_dist=0.0, max_dist=11.4025 ** 0.5,
                             min_angle=0.0, max_angle=2.0 * math.pi,
                             min_velocity=-0.3, max_velocity=1.8):
    """Fold normalize_kinematics' indexed column scaling into (offset, 1/scale) vectors."""
    dists = [2] + list(range(4, 3 * (n_agents - 1) + 2, 3)) + list(range(-8, 0, 2))
    angles = [1] + list(range(5, 3 * (n_agents - 1) + 3, 3)) + list(range(-7, 0, 2))
    velocities = [0] + list(range(3, 3 * (n_agents - 1) + 1, 3))

    off = np.zeros(input_size, dtype=np.float32)
    scl = np.ones(input_size, dtype=np.float32)
    for idx, lo, hi in ((dists, min_dist, max_dist),
                        (angles, min_angle, max_angle),
                        (velocities, min_velocity, max_velocity)):
        for i in idx:
            off[i] = lo
            scl[i] = 1.0 / (hi - lo)
    return off.reshape(1, -1), scl.reshape(1, -1)


# --------------------------------------------------------------------------- wrapper

@partial(jax.jit, static_argnames=("n_agents", "tb"))
def flexible_mlp_forward(x, hidden_ws, hidden_bs, w_out, b_out, log_stds, *,
                         n_agents, tb=8192):
    """x: (B, input_size) f32 raw kinematics.  Returns (mean_v, mean_a, log_std_v, log_std_a)."""
    B, input_size = x.shape
    out_size = w_out.shape[0]
    num_hidden = len(hidden_ws)

    off, scl = _normalization_constants(input_size, n_agents)

    # Batch tiling: big lane/sublane-aligned tiles, no input padding (Pallas masks the ragged
    # last block).  For large B cap the tile so the grid keeps >= 2 steps (v7x megacore).
    tb = max(128, (tb // 128) * 128)
    if B <= 128:
        tb_eff = B                                          # single full-dim block (always legal)
    else:
        tb_eff = min(tb, _round_up((B + 1) // 2, 128))
    num_blocks = pl.cdiv(B, tb_eff)

    def resident(shape):                                    # full-array block, fetched once, stays in VMEM
        return pl.BlockSpec(tuple(shape), lambda i, nd=len(shape): (0,) * nd)

    in_specs = [pl.BlockSpec((tb_eff, input_size), lambda i: (i, 0)),
                resident(off.shape), resident(scl.shape)]
    operands = [x, jnp.asarray(off), jnp.asarray(scl)]
    for w, b in zip(hidden_ws, hidden_bs):
        wb = w.astype(jnp.bfloat16)                         # tiny, resident; feeds MXU bf16 path
        in_specs += [resident(wb.shape), resident(b.shape)]
        operands += [wb, b]
    w_out_b = w_out.astype(jnp.bfloat16)
    in_specs += [resident(w_out_b.shape), resident(b_out.shape)]
    operands += [w_out_b, b_out]

    flops_per_row = 2 * (sum(int(w.shape[0] * w.shape[1]) for w in hidden_ws) + int(w_out.size))
    cost = pl.CostEstimate(
        flops=int(B) * flops_per_row,
        transcendentals=int(B) * int(out_size),
        bytes_accessed=int(x.size) * 4 + int(B) * int(out_size) * 4
                       + sum(int(o.size) * int(o.dtype.itemsize) for o in operands[1:]))

    out_t = pl.pallas_call(
        _make_flexible_mlp_kernel(num_hidden),
        out_shape=jax.ShapeDtypeStruct((out_size, B), jnp.float32),
        grid=(num_blocks,),
        in_specs=in_specs,
        out_specs=pl.BlockSpec((out_size, tb_eff), lambda i: (0, i)),
        compiler_params=pltpu.CompilerParams(dimension_semantics=("parallel",)),
        cost_estimate=cost,
    )(*operands)

    # Split the parameter column (intended semantics; see header note on the torch slicing bug).
    mean_v = out_t[:1, :].T[None]          # (1, B, 1)              == params[..., :1]
    mean_a = out_t[1:, :].T[None]          # (1, B, out_size - 1)   == params[..., 1:]
    return mean_v, mean_a, log_stds[0], log_stds[1]


# --------------------------------------------------------------------------- reference & init

def _reference_forward(x, off, scl, hidden_ws, hidden_bs, w_out, b_out):
    """Pure-JAX reference using the same bf16-operand / f32-accumulate matmul path."""
    h = (x - off) * scl
    for w, b in zip(hidden_ws, hidden_bs):
        h = jnp.maximum(
            jnp.dot(h.astype(jnp.bfloat16), w.astype(jnp.bfloat16),
                    preferred_element_type=jnp.float32) + b, 0.0)
    pre = jnp.dot(h.astype(jnp.bfloat16), w_out.astype(jnp.bfloat16).T,
                  preferred_element_type=jnp.float32) + b_out.T
    return jnp.tanh(pre)


def init_params(key, input_size, output_size, n_neurons):
    """torch.nn.Linear default init: uniform(-1/sqrt(fan_in), 1/sqrt(fan_in))."""
    sizes = [input_size] + list(n_neurons)
    hidden_ws, hidden_bs = [], []
    for l in range(len(n_neurons)):
        key, kw, kb = jax.random.split(key, 3)
        bound = 1.0 / math.sqrt(sizes[l])
        hidden_ws.append(jax.random.uniform(kw, (sizes[l], sizes[l + 1]), jnp.float32, -bound, bound))
        hidden_bs.append(jax.random.uniform(kb, (1, sizes[l + 1]), jnp.float32, -bound, bound))
    key, kw, kb = jax.random.split(key, 3)
    bound = 1.0 / math.sqrt(sizes[-1])
    w_out = jax.random.uniform(kw, (output_size, sizes[-1]), jnp.float32, -bound, bound)  # torch layout
    b_out = jax.random.uniform(kb, (output_size, 1), jnp.float32, -bound, bound)
    log_stds = jnp.log(1.0 * jnp.ones(2, jnp.float32))
    return hidden_ws, hidden_bs, w_out, b_out, log_stds


# --------------------------------------------------------------------------- demo

if __name__ == "__main__":
    n_agents = 4
    input_size = 3 * n_agents + 8        # 20 : layout normalize_kinematics expects
    output_size = 2                      # (mean velocity, mean angle)
    n_neurons = [32, 32]                 # n_hidden = 2, activation = ReLU, dropout eval-mode
    B = 2

    key = jax.random.PRNGKey(0)
    key, kx = jax.random.split(key)
    x = jax.random.normal(kx, (B, input_size), jnp.float32)

    hidden_ws, hidden_bs, w_out, b_out, log_stds = init_params(key, input_size, output_size, n_neurons)

    mean_v, mean_a, ls_v, ls_a = flexible_mlp_forward(
        x, hidden_ws, hidden_bs, w_out, b_out, log_stds, n_agents=n_agents)
    jax.block_until_ready((mean_v, mean_a, ls_v, ls_a))

    # Reconstruct full tanh params (B, out_size) and compare against a pure-JAX reference.
    params = jnp.concatenate([mean_v[0], mean_a[0]], axis=1)     # (B, out_size)
    off, scl = _normalization_constants(input_size, n_agents)
    ref = _reference_forward(x, jnp.asarray(off), jnp.asarray(scl),
                             hidden_ws, hidden_bs, w_out, b_out)

    assert mean_v.shape == (1, B, 1) and mean_a.shape == (1, B, output_size - 1)
    assert params.shape == (B, output_size)
    assert bool(jnp.all(jnp.abs(params - ref) < 1e-2))
    assert float(ls_v) == 0.0 and float(ls_a) == 0.0
    print("KERNEL_OK")
</pallas_src>

<mosaic_0001>
module attributes {stable_mosaic.version = 11 : i64} {
  func.func @kernel(%arg0: i32, %arg1: memref<2x20xf32, #tpu.memory_space<vmem>>, %arg2: memref<1x20xf32, #tpu.memory_space<vmem>>, %arg3: memref<1x20xf32, #tpu.memory_space<vmem>>, %arg4: memref<20x32xbf16, #tpu.memory_space<vmem>>, %arg5: memref<1x32xf32, #tpu.memory_space<vmem>>, %arg6: memref<32x32xbf16, #tpu.memory_space<vmem>>, %arg7: memref<1x32xf32, #tpu.memory_space<vmem>>, %arg8: memref<2x32xbf16, #tpu.memory_space<vmem>>, %arg9: memref<2x1xf32, #tpu.memory_space<vmem>>, %arg10: memref<2x2xf32, #tpu.memory_space<vmem>>) attributes {dimension_semantics = [#tpu.dimension_semantics<parallel>], iteration_bounds = array<i64: 1>, scalar_prefetch = 0 : i64, scratch_operands = 0 : i64, tpu.core_type = #tpu.core_type<tc>, window_params = [{transform_indices = @transform_0, window_bounds = array<i64: 2, 20>}, {pipeline_mode = #tpu.pipeline_mode<synchronous>, transform_indices = @transform_1, window_bounds = array<i64: 1, 20>}, {pipeline_mode = #tpu.pipeline_mode<synchronous>, transform_indices = @transform_2, window_bounds = array<i64: 1, 20>}, {pipeline_mode = #tpu.pipeline_mode<synchronous>, transform_indices = @transform_3, window_bounds = array<i64: 20, 32>}, {pipeline_mode = #tpu.pipeline_mode<synchronous>, transform_indices = @transform_4, window_bounds = array<i64: 1, 32>}, {pipeline_mode = #tpu.pipeline_mode<synchronous>, transform_indices = @transform_5, window_bounds = array<i64: 32, 32>}, {pipeline_mode = #tpu.pipeline_mode<synchronous>, transform_indices = @transform_6, window_bounds = array<i64: 1, 32>}, {pipeline_mode = #tpu.pipeline_mode<synchronous>, transform_indices = @transform_7, window_bounds = array<i64: 2, 32>}, {pipeline_mode = #tpu.pipeline_mode<synchronous>, transform_indices = @transform_8, window_bounds = array<i64: 2, 1>}, {transform_indices = @transform_9, window_bounds = array<i64: 2, 2>}]} {
    %c0 = arith.constant 0 : index
    %c0_0 = arith.constant 0 : index
    %0 = vector.load %arg1[%c0, %c0_0] : memref<2x20xf32, #tpu.memory_space<vmem>>, vector<2x20xf32>
    %c0_1 = arith.constant 0 : index
    %c0_2 = arith.constant 0 : index
    %1 = vector.load %arg2[%c0_1, %c0_2] : memref<1x20xf32, #tpu.memory_space<vmem>>, vector<1x20xf32>
    %2 = vector.broadcast %1 : vector<1x20xf32> to vector<2x20xf32>
    %3 = arith.subf %0, %2 : vector<2x20xf32>
    %c0_3 = arith.constant 0 : index
    %c0_4 = arith.constant 0 : index
    %4 = vector.load %arg3[%c0_3, %c0_4] : memref<1x20xf32, #tpu.memory_space<vmem>>, vector<1x20xf32>
    %5 = vector.broadcast %4 : vector<1x20xf32> to vector<2x20xf32>
    %6 = arith.mulf %3, %5 : vector<2x20xf32>
    %c0_5 = arith.constant 0 : index
    %c0_6 = arith.constant 0 : index
    %7 = vector.load %arg4[%c0_5, %c0_6] : memref<20x32xbf16, #tpu.memory_space<vmem>>, vector<20x32xbf16>
    %c0_7 = arith.constant 0 : index
    %c0_8 = arith.constant 0 : index
    %8 = vector.load %arg5[%c0_7, %c0_8] : memref<1x32xf32, #tpu.memory_space<vmem>>, vector<1x32xf32>
    %9 = arith.truncf %6 : vector<2x20xf32> to vector<2x20xbf16>
    %cst = arith.constant dense<0.000000e+00> : vector<2x32xf32>
    %10 = tpu.matmul %9, %7, %cst {dimension_numbers = #tpu.dot_dimension_numbers<[1], [0], [0], [1], [0, 0, 1, 1], [], []>} : vector<2x20xbf16>, vector<20x32xbf16>, vector<2x32xf32> -> vector<2x32xf32>
    %11 = vector.broadcast %8 : vector<1x32xf32> to vector<2x32xf32>
    %12 = arith.addf %10, %11 : vector<2x32xf32>
    %cst_9 = arith.constant 0.000000e+00 : f32
    %13 = vector.broadcast %cst_9 : f32 to vector<2x32xf32>
    %14 = arith.maximumf %12, %13 : vector<2x32xf32>
    %c0_10 = arith.constant 0 : index
    %c0_11 = arith.constant 0 : index
    %15 = vector.load %arg6[%c0_10, %c0_11] : memref<32x32xbf16, #tpu.memory_space<vmem>>, vector<32x32xbf16>
    %c0_12 = arith.constant 0 : index
    %c0_13 = arith.constant 0 : index
    %16 = vector.load %arg7[%c0_12, %c0_13] : memref<1x32xf32, #tpu.memory_space<vmem>>, vector<1x32xf32>
    %17 = arith.truncf %14 : vector<2x32xf32> to vector<2x32xbf16>
    %cst_14 = arith.constant dense<0.000000e+00> : vector<2x32xf32>
    %18 = tpu.matmul %17, %15, %cst_14 {dimension_numbers = #tpu.dot_dimension_numbers<[1], [0], [0], [1], [0, 0, 1, 1], [], []>} : vector<2x32xbf16>, vector<32x32xbf16>, vector<2x32xf32> -> vector<2x32xf32>
    %19 = vector.broadcast %16 : vector<1x32xf32> to vector<2x32xf32>
    %20 = arith.addf %18, %19 : vector<2x32xf32>
    %cst_15 = arith.constant 0.000000e+00 : f32
    %21 = vector.broadcast %cst_15 : f32 to vector<2x32xf32>
    %22 = arith.maximumf %20, %21 : vector<2x32xf32>
    %c0_16 = arith.constant 0 : index
    %c0_17 = arith.constant 0 : index
    %23 = vector.load %arg8[%c0_16, %c0_17] : memref<2x32xbf16, #tpu.memory_space<vmem>>, vector<2x32xbf16>
    %c0_18 = arith.constant 0 : index
    %c0_19 = arith.constant 0 : index
    %24 = vector.load %arg9[%c0_18, %c0_19] : memref<2x1xf32, #tpu.memory_space<vmem>>, vector<2x1xf32>
    %25 = arith.truncf %22 : vector<2x32xf32> to vector<2x32xbf16>
    %cst_20 = arith.constant dense<0.000000e+00> : vector<2x2xf32>
    %26 = tpu.matmul %23, %25, %cst_20 {dimension_numbers = #tpu.dot_dimension_numbers<[1], [1], [0], [0], [0, 0, 1, 0], [], []>} : vector<2x32xbf16>, vector<2x32xbf16>, vector<2x2xf32> -> vector<2x2xf32>
    %27 = vector.broadcast %24 : vector<2x1xf32> to vector<2x2xf32>
    %28 = arith.addf %26, %27 : vector<2x2xf32>
    %29 = math.tanh %28 : vector<2x2xf32>
    %c0_21 = arith.constant 0 : index
    %c0_22 = arith.constant 0 : index
    %30 = vector.load %arg10[%c0_21, %c0_22] : memref<2x2xf32, #tpu.memory_space<vmem>>, vector<2x2xf32>
    tpu.vector_store %arg10[%c0_21, %c0_22], %29 {strides = array<i32>} : memref<2x2xf32, #tpu.memory_space<vmem>>, vector<2x2xf32>,
    return
  }
  func.func @transform_0(%arg0: i32) -> (i32, i32) {
    %c0_i32 = arith.constant 0 : i32
    %c0_i32_0 = arith.constant 0 : i32
    return %arg0, %c0_i32 : i32, i32
  }
  func.func @transform_1(%arg0: i32) -> (i32, i32) {
    %c0_i32 = arith.constant 0 : i32
    %c0_i32_0 = arith.constant 0 : i32
    %c0_i32_1 = arith.constant 0 : i32
    return %c0_i32, %c0_i32_0 : i32, i32
  }
  func.func @transform_2(%arg0: i32) -> (i32, i32) {
    %c0_i32 = arith.constant 0 : i32
    %c0_i32_0 = arith.constant 0 : i32
    %c0_i32_1 = arith.constant 0 : i32
    return %c0_i32, %c0_i32_0 : i32, i32
  }
  func.func @transform_3(%arg0: i32) -> (i32, i32) {
    %c0_i32 = arith.constant 0 : i32
    %c0_i32_0 = arith.constant 0 : i32
    %c0_i32_1 = arith.constant 0 : i32
    return %c0_i32, %c0_i32_0 : i32, i32
  }
  func.func @transform_4(%arg0: i32) -> (i32, i32) {
    %c0_i32 = arith.constant 0 : i32
    %c0_i32_0 = arith.constant 0 : i32
    %c0_i32_1 = arith.constant 0 : i32
    return %c0_i32, %c0_i32_0 : i32, i32
  }
  func.func @transform_5(%arg0: i32) -> (i32, i32) {
    %c0_i32 = arith.constant 0 : i32
    %c0_i32_0 = arith.constant 0 : i32
    %c0_i32_1 = arith.constant 0 : i32
    return %c0_i32, %c0_i32_0 : i32, i32
  }
  func.func @transform_6(%arg0: i32) -> (i32, i32) {
    %c0_i32 = arith.constant 0 : i32
    %c0_i32_0 = arith.constant 0 : i32
    %c0_i32_1 = arith.constant 0 : i32
    return %c0_i32, %c0_i32_0 : i32, i32
  }
  func.func @transform_7(%arg0: i32) -> (i32, i32) {
    %c0_i32 = arith.constant 0 : i32
    %c0_i32_0 = arith.constant 0 : i32
    %c0_i32_1 = arith.constant 0 : i32
    return %c0_i32, %c0_i32_0 : i32, i32
  }
  func.func @transform_8(%arg0: i32) -> (i32, i32) {
    %c0_i32 = arith.constant 0 : i32
    %c0_i32_0 = arith.constant 0 : i32
    %c0_i32_1 = arith.constant 0 : i32
    return %c0_i32, %c0_i32_0 : i32, i32
  }
  func.func @transform_9(%arg0: i32) -> (i32, i32) {
    %c0_i32 = arith.constant 0 : i32
    %c0_i32_0 = arith.constant 0 : i32
    return %c0_i32, %arg0 : i32, i32
  }
}

</mosaic_0001>

<llo_original>
// kernel: flexible_mlp_forward.1
$region0: #{flexible_mlp_forward.1}
  #allocation0 [shape = 'u32[]', space=smem, size = 0x4, offset = 0x4, fixed_abs, tag = 'smem constant byte address 0x4 - core index']
  #allocation1 [shape = 'u32[72,128]{1,0:T(1,128)}', space=vmem, size = 0x9000, scoped, tag = 'internal scratch']
  %s0 = inlined_call_operand.vmem [shape: f32[2,20], index: 0, kind: input, shape index: {}]
  %s1 = inlined_call_operand.vmem [shape: f32[1,20], index: 1, kind: input, shape index: {}]
  %s2 = inlined_call_operand.vmem [shape: f32[1,20], index: 2, kind: input, shape index: {}]
  %s3 = inlined_call_operand.vmem [shape: bf16[20,32], index: 3, kind: input, shape index: {}]
  %s4 = inlined_call_operand.vmem [shape: f32[1,32], index: 4, kind: input, shape index: {}]
  %s5 = inlined_call_operand.vmem [shape: bf16[32,32], index: 5, kind: input, shape index: {}]
  %s6 = inlined_call_operand.vmem [shape: f32[1,32], index: 6, kind: input, shape index: {}]
  %s7 = inlined_call_operand.vmem [shape: bf16[2,32], index: 7, kind: input, shape index: {}]
  %s8 = inlined_call_operand.vmem [shape: f32[2,1], index: 8, kind: input, shape index: {}]
  %s9 = inlined_call_operand.vmem [shape: f32[2,2], index: 9, kind: output, shape index: {}]
  %s10 = sld [smem:[#allocation0]]
  $region46: #{flexible_mlp_forward.1} parent=0
    _
  %s12 = ssub.s32 1, %s10
  %s13 = scalar_select 0, %s12, %s10
  // Predicated region
  $region2: #{flexible_mlp_forward.1} parent=0 // pred_check
    _
  $region3: #{flexible_mlp_forward.1} parent=0 // pred_check_branch
    %15 = sbr.rel (0) target = $region5
  $region4: #{flexible_mlp_forward.1} parent=0 // pred_region
    _
  $region5: #{flexible_mlp_forward.1} parent=0 // pred_fallthru
    _
  // Predicated region
  $region6: #{flexible_mlp_forward.1} parent=0 // pred_check
    _
  $region7: #{flexible_mlp_forward.1} parent=0 // pred_check_branch
    %17 = sbr.rel (0) target = $region9
  $region8: #{flexible_mlp_forward.1} parent=0 // pred_region
    _
  $region9: #{flexible_mlp_forward.1} parent=0 // pred_fallthru
    _
  // Predicated region
  $region10: #{flexible_mlp_forward.1} parent=0 // pred_check
    _
  $region11: #{flexible_mlp_forward.1} parent=0 // pred_check_branch
    %19 = sbr.rel (0) target = $region13
  $region12: #{flexible_mlp_forward.1} parent=0 // pred_region
    _
  $region13: #{flexible_mlp_forward.1} parent=0 // pred_fallthru
    _
  // Predicated region
  $region14: #{flexible_mlp_forward.1} parent=0 // pred_check
    _
  $region15: #{flexible_mlp_forward.1} parent=0 // pred_check_branch
    %21 = sbr.rel (0) target = $region17
  $region16: #{flexible_mlp_forward.1} parent=0 // pred_region
    _
  $region17: #{flexible_mlp_forward.1} parent=0 // pred_fallthru
    _
  // Predicated region
  $region18: #{flexible_mlp_forward.1} parent=0 // pred_check
    _
  $region19: #{flexible_mlp_forward.1} parent=0 // pred_check_branch
    %23 = sbr.rel (0) target = $region21
  $region20: #{flexible_mlp_forward.1} parent=0 // pred_region
    _
  $region21: #{flexible_mlp_forward.1} parent=0 // pred_fallthru
    _
  // Predicated region
  $region22: #{flexible_mlp_forward.1} parent=0 // pred_check
    _
  $region23: #{flexible_mlp_forward.1} parent=0 // pred_check_branch
    %25 = sbr.rel (0) target = $region25
  $region24: #{flexible_mlp_forward.1} parent=0 // pred_region
    _
  $region25: #{flexible_mlp_forward.1} parent=0 // pred_fallthru
    _
  // Predicated region
  $region26: #{flexible_mlp_forward.1} parent=0 // pred_check
    _
  $region27: #{flexible_mlp_forward.1} parent=0 // pred_check_branch
    %27 = sbr.rel (0) target = $region29
  $region28: #{flexible_mlp_forward.1} parent=0 // pred_region
    _
  $region29: #{flexible_mlp_forward.1} parent=0 // pred_fallthru
    _
  // Predicated region
  $region30: #{flexible_mlp_forward.1} parent=0 // pred_check
    _
  $region31: #{flexible_mlp_forward.1} parent=0 // pred_check_branch
    %29 = sbr.rel (0) target = $region33
  $region32: #{flexible_mlp_forward.1} parent=0 // pred_region
    _
  $region33: #{flexible_mlp_forward.1} parent=0 // pred_fallthru
    _
  // Predicated region
  $region34: #{flexible_mlp_forward.1} parent=0 // pred_check
    _
  $region35: #{flexible_mlp_forward.1} parent=0 // pred_check_branch
    %31 = sbr.rel (0) target = $region37
  $region36: #{flexible_mlp_forward.1} parent=0 // pred_region
    _
  $region37: #{flexible_mlp_forward.1} parent=0 // pred_fallthru
    _
  %v33 = vld [vmem:[%s0] sm:$0x3]
  %v34 = vld [vmem:[%s1] sm:$0x1]
  %v36 = vperm.slane %v34, 0
  %v38 = vsub.f32 %v33, %v36
  %v39 = vld [vmem:[%s2] sm:$0x1]
  %v41 = vperm.slane %v39, 0
  %v43 = vmul.f32 %v38, %v41
  %v44 = vld [vmem:[%s3] sm:$0xf]
  %v45 = vld [vmem:[%s3 + $0x4] sm:$0xf]
  %v46 = vld [vmem:[%s3 + $0x8] sm:$0x3]
  %v47 = vld [vmem:[%s4] sm:$0x1]
  %v48 = vpack.c.bf16 %v43, %v43
  %v50 = vperm.slane %v47, 0
  %v55 = vunpack.c.l.b16 %v44
  %v56 = vunpack.c.l.b16 %v45
  %v57 = vunpack.c.l.b16 %v46
  %v58 = vpack.c.b16 %v56, %v55
  %v59 = vpack.c.b16 %v57, %v57
  %vm61 = vcmask 162816
  %v63 = vsel %vm61, %v48, 0
  %vm65 = vcmask 1041408
  %v67 = vsel %vm65, %v59, 0
  %69 = vmatpush.bf16.msra.mxu0 0
  %70 = vmatpush.bf16.msra.mxu0 0
  %71 = vmatpush.bf16.msra.mxu0 0
  %72 = vmatpush.bf16.msra.mxu0 0
  %73 = vmatpush.bf16.msra.mxu0 0
  %74 = vmatpush.bf16.msra.mxu0 0
  %75 = vmatpush.bf16.msra.mxu0 %v67
  %76 = vmatpush.bf16.msra.mxu0 %v58
  %77 = vmatmul.bf16.gmra.mxu0 %v63
  %v78 = vpop.f32.mrf.mxu0
  %v79 = vadd.f32 %v50, %v78
  %v80 = vpop.f32.mrf.mxu0
  %81 = vdwg.mxu0
  %v82 = vmax.f32 %v79, 0.0
  %v83 = vld [vmem:[%s5] sm:$0xf]
  %v84 = vld [vmem:[%s5 + $0x4] sm:$0xf]
  %v85 = vld [vmem:[%s5 + $0x8] sm:$0xf]
  %v86 = vld [vmem:[%s5 + $0xc] sm:$0xf]
  %v87 = vld [vmem:[%s6] sm:$0x1]
  %v88 = vpack.c.bf16 %v82, %v82
  %v90 = vperm.slane %v87, 0
  %v96 = vunpack.c.l.b16 %v83
  %v97 = vunpack.c.l.b16 %v84
  %v98 = vunpack.c.l.b16 %v85
  %v99 = vunpack.c.l.b16 %v86
  %v100 = vpack.c.b16 %v97, %v96
  %v101 = vpack.c.b16 %v99, %v98
  %vm104 = vcmask 261120
  %v106 = vsel %vm104, %v88, 0
  %108 = vmatpush.bf16.msra.mxu0 0
  %109 = vmatpush.bf16.msra.mxu0 0
  %110 = vmatpush.bf16.msra.mxu0 0
  %111 = vmatpush.bf16.msra.mxu0 0
  %112 = vmatpush.bf16.msra.mxu0 0
  %113 = vmatpush.bf16.msra.mxu0 0
  %114 = vmatpush.bf16.msra.mxu0 %v101
  %115 = vmatpush.bf16.msra.mxu0 %v100
  %116 = vmatmul.bf16.gmra.mxu0 %v106
  %v117 = vpop.f32.mrf.mxu0
  %v118 = vadd.f32 %v90, %v117
  %v119 = vpop.f32.mrf.mxu0
  %120 = vdwg.mxu0
  %v121 = vmax.f32 %v118, 0.0
  %v122 = vld [vmem:[%s7] sm:$0x1]
  %v123 = vld [vmem:[%s8] sm:$0x3]
  %v124 = vpack.c.bf16 %v121, %v121
  %126 = vset.pattern.permute.xlu0 0
  %127 = vperm.xlu0 %126, %v123
  %v128 = vpop.permute.xlu0 %127
  %v131 = vsel %vm104, %v122, 0
  %v134 = vsel %vm104, %v124, 0
  %136 = vmatpush.bf16.xpose.msra.mxu0 0
  %137 = vmatpush.bf16.xpose.msra.mxu0 0
  %138 = vmatpush.bf16.xpose.msra.mxu0 0
  %139 = vmatpush.bf16.xpose.msra.mxu0 0
  %140 = vmatpush.bf16.xpose.msra.mxu0 0
  %141 = vmatpush.bf16.xpose.msra.mxu0 0
  %142 = vmatpush.bf16.xpose.msra.mxu0 0
  %143 = vmatpush.bf16.xpose.msra.mxu0 %v134
  %144 = vmatmul.bf16.gmra.mxu0 %v131
  %v145 = vpop.f32.mrf.mxu0
  %v146 = vadd.f32 %v128, %v145
  %v147 = vpop.f32.mrf.mxu0
  %148 = vdwg.mxu0
  %v149 = vtanh.pop %v146
  %vm150 = vcmask 9216
  %151 = vst.msk [vmem:[%s9] sm:$0x3] %vm150, %v149
  // Predicated region
  $region38: #{flexible_mlp_forward.1} parent=0 // pred_check
    _
  $region39: #{flexible_mlp_forward.1} parent=0 // pred_check_branch
    %153 = sbr.rel (0) target = $region41
  $region40: #{flexible_mlp_forward.1} parent=0 // pred_region
    _
  $region41: #{flexible_mlp_forward.1} parent=0 // pred_fallthru
    _
  // Predicated region
  $region42: #{flexible_mlp_forward.1} parent=0 // pred_check
    _
  $region43: #{flexible_mlp_forward.1} parent=0 // pred_check_branch
    %155 = sbr.rel (0) target = $region45
  $region44: #{flexible_mlp_forward.1} parent=0 // pred_region
    _
  $region45: #{flexible_mlp_forward.1} parent=0 // pred_fallthru
    _

</llo_original>
